<compile_context>
chip_gen: v7x
topology: tpu7x:2x2x1
jax: 0.10.0
libtpu: 0.0.40
codegen_flags: <defaults>
</compile_context>

<pallas_src>
import functools

import jax
import jax.numpy as jnp
from jax.experimental import pallas as pl
from jax.experimental.pallas import tpu as pltpu


def _tpu_config():
    """Returns (num_parallel_groups, per-core VMEM bytes) with conservative fallbacks."""
    vmem = 64 * 1024 * 1024          # v7x per-TC floor: safe everywhere
    try:
        cap = getattr(pltpu.get_tpu_info(), "vmem_capacity_bytes", None)
        if cap:
            vmem = int(cap)
    except Exception:
        pass
    groups = 1
    try:
        kind = jax.devices()[0].device_kind.lower()
        if "7" in kind:              # v7x: two TensorCores behind one Pallas program
            groups = 2
            vmem = min(vmem, 64 * 1024 * 1024)   # 64 MiB per TC on v7x
    except Exception:
        pass
    return groups, vmem


def _nll_sum_kernel(x_ref, t_ref, o_ref, acc_ref, *,
                    n_rows, tm, chunk, n_chunks, blocks_per_group):
    g = pl.program_id(0)             # parallel group (per-TensorCore on v7x)
    i = pl.program_id(1)             # reduction step within the group

    @pl.when(i == 0)
    def _():
        acc_ref[...] = jnp.zeros_like(acc_ref)

    # Logical (unclamped) block id: rows past n_rows (tail block, or a duplicated clamped
    # block when total_blocks is odd on v7x) are masked below and contribute exactly 0.
    blk = g * blocks_per_group + i
    base_row = blk * tm

    @pl.loop(0, n_chunks)
    def _(c):
        r0 = pl.multiple_of(c * chunk, chunk)
        x = x_ref[pl.ds(r0, chunk), :]        # (chunk, V) log-probs, input dtype
        t = t_ref[pl.ds(r0, chunk), :]        # (chunk, 1) i32 class ids

        row = base_row + r0 + jax.lax.broadcasted_iota(jnp.int32, (chunk, 1), 0)
        # Fold ignore_index and the row-bounds predicate into the target vector first,
        # then do a single full-tile compare (no class ever equals -1).
        t_eff = jnp.where((t != 0) & (row < n_rows), t, -1)          # (chunk, 1)

        cls = jax.lax.broadcasted_iota(jnp.int32, (chunk, x.shape[1]), 1)
        # Select-instead-of-multiply: immune to -inf log-probs / garbage tail rows.
        picked = jnp.where(cls == t_eff, x.astype(jnp.float32), 0.0)  # (chunk, V) f32
        acc_ref[...] += jnp.sum(picked, axis=0, keepdims=True)        # (1, V) lane-resident

    @pl.when(i == pl.num_programs(1) - 1)
    def _():
        total = jnp.sum(acc_ref[...], axis=1, keepdims=True)          # (1, 1)
        o_ref[...] = (-total).reshape(1, 1, 1)


def sequence_criterion_loss(inputs, targets):
    """Pallas equivalent of SequenceCriterion.forward (NLLLoss, ignore_index=0, reduction=sum)."""
    V = inputs.shape[-1]
    N = int(targets.size)
    x = inputs.reshape(N, V)                       # keep input dtype: no extra HBM cast pass
    t = targets.reshape(N, 1).astype(jnp.int32)    # tiny; cast is negligible

    itemsize = jnp.dtype(x.dtype).itemsize
    sub = max(8, 32 // itemsize)                   # sublane multiple: 8 f32, 16 bf16, 32 int8

    n_groups, vmem_cap = _tpu_config()
    vmem_limit = min(96 * 1024 * 1024, (vmem_cap * 3) // 4)
    buf_budget = vmem_limit // 2                   # for the 2x double-buffered (x, t) blocks

    # Per-row VMEM cost: x row + the (tm, 1) int32 target block, which pads to 128 lanes.
    per_row_bytes = V * itemsize + 128 * 4

    rows_cap = -(-N // sub) * sub
    tm = buf_budget // (2 * per_row_bytes)
    tm = max(sub, min((tm // sub) * sub, rows_cap, 16384))

    # In-kernel chunking: bound the element-wise working set to ~512 KiB of x per chunk.
    chunk = max(sub, min(tm, ((512 * 1024) // (V * itemsize)) // sub * sub))
    tm = max(chunk, (tm // chunk) * chunk)
    n_chunks = tm // chunk

    # Insurance for extreme V where even the minimum tile exceeds the budget.
    vmem_limit = max(vmem_limit, 2 * tm * per_row_bytes + (8 << 20))

    total_blocks = -(-N // tm)
    blocks_per_group = -(-total_blocks // n_groups)
    last_block = total_blocks - 1

    def in_map(g, i):
        # Clamp so DMAs never run past the array; a duplicated clamped block (odd
        # total_blocks with 2 groups) is neutralized by the in-kernel row < N mask.
        return (jnp.minimum(g * blocks_per_group + i, last_block), 0)

    kernel = functools.partial(
        _nll_sum_kernel, n_rows=N, tm=tm, chunk=chunk, n_chunks=n_chunks,
        blocks_per_group=blocks_per_group)

    out = pl.pallas_call(
        kernel,
        out_shape=jax.ShapeDtypeStruct((n_groups, 1, 1), jnp.float32),
        grid_spec=pltpu.PrefetchScalarGridSpec(
            num_scalar_prefetch=0,
            grid=(n_groups, blocks_per_group),
            in_specs=[
                pl.BlockSpec((tm, V), in_map),     # log-prob rows
                pl.BlockSpec((tm, 1), in_map),     # target ids
            ],
            out_specs=pl.BlockSpec((1, 1, 1), lambda g, i: (g, 0, 0)),
            scratch_shapes=[pltpu.VMEM((1, V), jnp.float32)],
        ),
        compiler_params=pltpu.CompilerParams(
            dimension_semantics=("parallel", "arbitrary"),
            vmem_limit_bytes=vmem_limit,
        ),
        cost_estimate=pl.CostEstimate(
            flops=3 * N * V,
            transcendentals=0,
            bytes_accessed=N * V * itemsize + N * 4 + n_groups * 4,
        ),
    )(x, t)

    # TODO(synk): highest-ceiling structural win is not streaming the full (N, V) tensor at
    # all: either fuse the upstream log_softmax (take raw logits, logsumexp in-kernel) or a
    # scalar-prefetch + manual-DMA gather that fetches only the 128-lane slice containing
    # targets[i] per row; both change the module interface, so they are not done here.
    return jnp.sum(out)


def _reference_loss(inputs, targets):
    V = inputs.shape[-1]
    N = int(targets.size)
    x = inputs.reshape(N, V).astype(jnp.float32)
    t = targets.reshape(N).astype(jnp.int32)
    picked = jnp.take_along_axis(x, t[:, None], axis=1)[:, 0]
    return -jnp.sum(jnp.where(t != 0, picked, 0.0))


if __name__ == "__main__":
    key = jax.random.PRNGKey(0)
    B, T, V = 2, 8, 32
    k1, k2 = jax.random.split(key)

    logits = jax.random.normal(k1, (B, T, V), dtype=jnp.float32)
    log_probs = jax.nn.log_softmax(logits, axis=-1)          # NLLLoss expects log-probs
    targets = jax.random.randint(k2, (B, T), 0, V, dtype=jnp.int32)   # includes 0s (ignored)

    loss = sequence_criterion_loss(log_probs, targets)
    loss = jax.block_until_ready(loss)

    ref = _reference_loss(log_probs, targets)
    assert jnp.allclose(loss, ref, rtol=1e-5, atol=1e-5), (loss, ref)

    print("KERNEL_OK")
</pallas_src>

<mosaic_0001>
module attributes {stable_mosaic.version = 11 : i64} {
  func.func @_nll_sum_kernel(%arg0: i32, %arg1: i32, %arg2: memref<16x32xf32, #tpu.memory_space<vmem>>, %arg3: memref<16x1xi32, #tpu.memory_space<vmem>>, %arg4: memref<1x1x1xf32, #tpu.memory_space<vmem>>, %arg5: memref<1x32xf32, #tpu.memory_space<vmem>>) attributes {dimension_semantics = [#tpu.dimension_semantics<parallel>, #tpu.dimension_semantics<arbitrary>], iteration_bounds = array<i64: 1, 1>, scalar_prefetch = 0 : i64, scratch_operands = 1 : i64, tpu.core_type = #tpu.core_type<tc>, window_params = [{transform_indices = @transform_0, window_bounds = array<i64: 16, 32>}, {transform_indices = @transform_1, window_bounds = array<i64: 16, 1>}, {transform_indices = @transform_2, window_bounds = array<i64: 1, 1, 1>}]} {
    %c0_i32 = arith.constant 0 : i32
    %0 = arith.cmpi eq, %arg1, %c0_i32 : i32
    %1 = arith.extui %0 : i1 to i32
    %c0_i32_0 = arith.constant 0 : i32
    %2 = arith.cmpi ne, %1, %c0_i32_0 : i32
    scf.if %2 {
      %cst_16 = arith.constant 0.000000e+00 : f32
      %38 = vector.broadcast %cst_16 : f32 to vector<1x32xf32>
      %c0_17 = arith.constant 0 : index
      %c0_18 = arith.constant 0 : index
      %39 = vector.load %arg5[%c0_17, %c0_18] : memref<1x32xf32, #tpu.memory_space<vmem>>, vector<1x32xf32>
      tpu.vector_store %arg5[%c0_17, %c0_18], %38 {strides = array<i32>} : memref<1x32xf32, #tpu.memory_space<vmem>>, vector<1x32xf32>,
    } else {
    }
    %c1_i32 = arith.constant 1 : i32
    %3 = arith.muli %arg0, %c1_i32 : i32
    %4 = arith.addi %3, %arg1 : i32
    %c16_i32 = arith.constant 16 : i32
    %5 = arith.muli %4, %c16_i32 : i32
    %c0_i32_1 = arith.constant 0 : i32
    %c1_i32_2 = arith.constant 1 : i32
    %6 = arith.muli %c0_i32_1, %c1_i32_2 : i32
    %c0_i32_3 = arith.constant 0 : i32
    %7 = arith.addi %c0_i32_3, %6 : i32
    %c16_i32_4 = arith.constant 16 : i32
    %8 = arith.muli %7, %c16_i32_4 : i32
    %9 = tpu.assume_multiple %8, 16 : i32
    %10 = arith.index_cast %9 : i32 to index
    %c0 = arith.constant 0 : index
    %11 = vector.load %arg2[%10, %c0] : memref<16x32xf32, #tpu.memory_space<vmem>>, vector<16x32xf32>
    %12 = arith.index_cast %9 : i32 to index
    %c0_5 = arith.constant 0 : index
    %13 = vector.load %arg3[%12, %c0_5] : memref<16x1xi32, #tpu.memory_space<vmem>>, vector<16x1xi32>
    %14 = arith.addi %5, %9 : i32
    %15 = tpu.iota {dimensions = array<i32: 0>} : vector<16x1xi32>
    %16 = vector.broadcast %14 : i32 to vector<16x1xi32>
    %17 = arith.addi %16, %15 : vector<16x1xi32>
    %c0_i32_6 = arith.constant 0 : i32
    %18 = vector.broadcast %c0_i32_6 : i32 to vector<16x1xi32>
    %19 = arith.cmpi ne, %13, %18 : vector<16x1xi32>
    %c16_i32_7 = arith.constant 16 : i32
    %20 = vector.broadcast %c16_i32_7 : i32 to vector<16x1xi32>
    %21 = arith.cmpi slt, %17, %20 : vector<16x1xi32>
    %22 = arith.andi %19, %21 : vector<16x1xi1>
    %c-1_i32 = arith.constant -1 : i32
    %23 = vector.broadcast %c-1_i32 : i32 to vector<16x1xi32>
    %24 = arith.select %22, %13, %23 : vector<16x1xi1>, vector<16x1xi32>
    %25 = tpu.iota {dimensions = array<i32: 1>} : vector<16x32xi32>
    %26 = vector.broadcast %24 : vector<16x1xi32> to vector<16x32xi32>
    %27 = arith.cmpi eq, %25, %26 : vector<16x32xi32>
    %cst = arith.constant 0.000000e+00 : f32
    %28 = vector.broadcast %cst : f32 to vector<16x32xf32>
    %29 = arith.select %27, %11, %28 : vector<16x32xi1>, vector<16x32xf32>
    %c0_8 = arith.constant 0 : index
    %c0_9 = arith.constant 0 : index
    %30 = vector.load %arg5[%c0_8, %c0_9] : memref<1x32xf32, #tpu.memory_space<vmem>>, vector<1x32xf32>
    %cst_10 = arith.constant dense<0.000000e+00> : vector<32xf32>
    %31 = vector.multi_reduction <add>, %29, %cst_10 [0] : vector<16x32xf32> to vector<32xf32>
    %32 = vector.shape_cast %31 : vector<32xf32> to vector<1x32xf32>
    %33 = arith.addf %30, %32 : vector<1x32xf32>
    %c0_11 = arith.constant 0 : index
    %c0_12 = arith.constant 0 : index
    %34 = vector.load %arg5[%c0_11, %c0_12] : memref<1x32xf32, #tpu.memory_space<vmem>>, vector<1x32xf32>
    tpu.vector_store %arg5[%c0_11, %c0_12], %33 {strides = array<i32>} : memref<1x32xf32, #tpu.memory_space<vmem>>, vector<1x32xf32>,
    %c1_i32_13 = arith.constant 1 : i32
    %c0_i32_14 = arith.constant 0 : i32
    %35 = arith.cmpi eq, %arg1, %c0_i32_14 : i32
    %36 = arith.extui %35 : i1 to i32
    %c0_i32_15 = arith.constant 0 : i32
    %37 = arith.cmpi ne, %36, %c0_i32_15 : i32
    scf.if %37 {
      %c0_16 = arith.constant 0 : index
      %c0_17 = arith.constant 0 : index
      %38 = vector.load %arg5[%c0_16, %c0_17] : memref<1x32xf32, #tpu.memory_space<vmem>>, vector<1x32xf32>
      %cst_18 = arith.constant dense<0.000000e+00> : vector<1xf32>
      %39 = vector.multi_reduction <add>, %38, %cst_18 [1] : vector<1x32xf32> to vector<1xf32>
      %40 = vector.shape_cast %39 : vector<1xf32> to vector<1x1xf32>
      %cst_19 = arith.constant 0.000000e+00 : f32
      %41 = vector.broadcast %cst_19 : f32 to vector<1x1xf32>
      %42 = arith.subf %41, %40 : vector<1x1xf32>
      %43 = vector.shape_cast %42 : vector<1x1xf32> to vector<1x1x1xf32>
      %c0_20 = arith.constant 0 : index
      %c0_21 = arith.constant 0 : index
      %c0_22 = arith.constant 0 : index
      %44 = vector.load %arg4[%c0_20, %c0_21, %c0_22] : memref<1x1x1xf32, #tpu.memory_space<vmem>>, vector<1x1x1xf32>
      tpu.vector_store %arg4[%c0_20, %c0_21, %c0_22], %43 {strides = array<i32>} : memref<1x1x1xf32, #tpu.memory_space<vmem>>, vector<1x1x1xf32>,
    } else {
    }
    return
  }
  func.func @transform_0(%arg0: i32, %arg1: i32) -> (i32, i32) {
    %c1_i32 = arith.constant 1 : i32
    %0 = arith.muli %arg0, %c1_i32 : i32
    %1 = arith.addi %0, %arg1 : i32
    %c0_i32 = arith.constant 0 : i32
    %2 = arith.minsi %1, %c0_i32 : i32
    %c0_i32_0 = arith.constant 0 : i32
    %c0_i32_1 = arith.constant 0 : i32
    return %2, %c0_i32_0 : i32, i32
  }
  func.func @transform_1(%arg0: i32, %arg1: i32) -> (i32, i32) {
    %c1_i32 = arith.constant 1 : i32
    %0 = arith.muli %arg0, %c1_i32 : i32
    %1 = arith.addi %0, %arg1 : i32
    %c0_i32 = arith.constant 0 : i32
    %2 = arith.minsi %1, %c0_i32 : i32
    %c0_i32_0 = arith.constant 0 : i32
    %c0_i32_1 = arith.constant 0 : i32
    return %2, %c0_i32_0 : i32, i32
  }
  func.func @transform_2(%arg0: i32, %arg1: i32) -> (i32, i32, i32) {
    %c0_i32 = arith.constant 0 : i32
    %c0_i32_0 = arith.constant 0 : i32
    %c0_i32_1 = arith.constant 0 : i32
    return %arg0, %c0_i32, %c0_i32_0 : i32, i32, i32
  }
}

</mosaic_0001>

<llo_original>
// kernel: tpu_custom_call.1
$region0: #{tpu_custom_call.1}
  #allocation0 [shape = 'u32[]', space=smem, size = 0x4, offset = 0x4, fixed_abs, tag = 'smem constant byte address 0x4 - core index']
  #allocation1 [shape = 'u32[144,128]{1,0:T(1,128)}', space=vmem, size = 0x12000, scoped, tag = 'internal scratch']
  #allocation2 [shape = 'f32[1,32]{1,0:T(1,128)}', space=vmem, size = 0x200, scoped, tag = 'scratch operand']
  %s0 = inlined_call_operand.vmem [shape: f32[16,32], index: 0, kind: input, shape index: {}]
  %s1 = inlined_call_operand.vmem [shape: s32[16,1], index: 1, kind: input, shape index: {}]
  %s2 = inlined_call_operand.hbm [shape: f32[1,1,1], index: 2, kind: output, shape index: {}]
  %s3 = sld [smem:[#allocation0]]
  $region26: #{tpu_custom_call.1} parent=0
    _
  %s5 = ssub.s32 1, %s3
  %s6 = scalar_select 0, %s5, %s3
  $region1: #{tpu_custom_call.1} parent=0
    #allocation3 [shape = 'u8[512]{0}', space=vmem, size = 0x400, scoped, tag = 'output window, operand 0, single buffered']
    #allocation4 [shape = 's32[1]{0}', space=sflag, size = 0x4, scoped, tag = 'scoped memory for tpu_custom_call.1']
    %7 = vsyncpa [#allocation4], 0
    // Predicated region
    $region2: #{tpu_custom_call.1} parent=1 // pred_check
      _
    $region3: #{tpu_custom_call.1} parent=1 // pred_check_branch
      %9 = sbr.rel (0) target = $region5
    $region4: #{tpu_custom_call.1} parent=1 // pred_region
      %s10 = sadd.s32 0, 0
      %p11 = scmp.lt.s32.totalorder %s10, 0
      %s12 = scalar_select %p11, %s10, 0
      %s13 = smul.u32 2, %s12
      %p14 = scmp.lt.s32.totalorder %s13, 1
      %s15 = scalar_select %p14, %s13, 1
      %s16 = smul.addr %s15, 8
      %s17 = scalar_lea.vmem %s0, %s16
      %s18 = sadd.s32 0, 0
      %p19 = scmp.lt.s32.totalorder %s18, 0
      %s20 = scalar_select %p19, %s18, 0
      %s21 = smul.u32 2, %s20
    $region5: #{tpu_custom_call.1} parent=1 // pred_fallthru
      _
    // Predicated region
    $region6: #{tpu_custom_call.1} parent=1 // pred_check
      _
    $region7: #{tpu_custom_call.1} parent=1 // pred_check_branch
      %23 = sbr.rel (0) target = $region9
    $region8: #{tpu_custom_call.1} parent=1 // pred_region
      %s24 = sadd.s32 0, 0
      %p25 = scmp.lt.s32.totalorder %s24, 0
      %s26 = scalar_select %p25, %s24, 0
      %s27 = smul.u32 2, %s26
      %p28 = scmp.lt.s32.totalorder %s27, 1
      %s29 = scalar_select %p28, %s27, 1
      %s30 = smul.addr %s29, 8
      %s31 = scalar_lea.vmem %s1, %s30
      %s32 = sadd.s32 0, 0
      %p33 = scmp.lt.s32.totalorder %s32, 0
      %s34 = scalar_select %p33, %s32, 0
      %s35 = smul.u32 2, %s34
    $region9: #{tpu_custom_call.1} parent=1 // pred_fallthru
      _
    %s36 = sadd.s32 0, 0
    %p37 = scmp.lt.s32.totalorder %s36, 0
    %s38 = scalar_select %p37, %s36, 0
    %s39 = smul.u32 2, %s38
    %p40 = scmp.lt.s32.totalorder %s39, 1
    %s41 = scalar_select %p40, %s39, 1
    %s42 = smul.addr %s41, 8
    %s43 = scalar_lea.vmem %s0, %s42
    %s44 = sadd.s32 0, 0
    %p45 = scmp.lt.s32.totalorder %s44, 0
    %s46 = scalar_select %p45, %s44, 0
    %s47 = smul.u32 2, %s46
    %p48 = scmp.lt.s32.totalorder %s47, 1
    %s49 = scalar_select %p48, %s47, 1
    %s50 = smul.addr %s49, 8
    %s51 = scalar_lea.vmem %s1, %s50
    %s52 = sadd.s32 0, 0
    %p53 = scmp.lt.s32.totalorder %s52, 0
    %s54 = scalar_select %p53, %s52, 0
    %s55 = smul.u32 2, %s54
    %p56 = scmp.lt.s32.totalorder %s55, 1
    %s57 = scalar_select %p56, %s55, 1
    %s58 = smul.addr %s57, 8
    %s59 = scalar_lea.vmem %s0, %s58
    %s60 = sadd.s32 0, 0
    %p61 = scmp.lt.s32.totalorder %s60, 0
    %s62 = scalar_select %p61, %s60, 0
    %s63 = smul.u32 2, %s62
    %s64 = sadd.s32 0, 0
    %p65 = scmp.lt.s32.totalorder %s64, 0
    %s66 = scalar_select %p65, %s64, 0
    %s67 = smul.u32 2, %s66
    %p68 = scmp.lt.s32.totalorder %s67, 1
    %s69 = scalar_select %p68, %s67, 1
    %s70 = smul.addr %s69, 8
    %s71 = scalar_lea.vmem %s1, %s70
    %s72 = sadd.s32 0, 0
    %p73 = scmp.lt.s32.totalorder %s72, 0
    %s74 = scalar_select %p73, %s72, 0
    %s75 = smul.u32 2, %s74
    %p76 = scmp.eq.s32.totalorder 0, 0
    // Predicated region
    $region10: #{tpu_custom_call.1} parent=1 // pred_check
      %p77 = pneg %p76
    $region11: #{tpu_custom_call.1} parent=1 // pred_check_branch
      %79 = sbr.rel (%p77) target = $region13
    $region12: #{tpu_custom_call.1} parent=1 // pred_region
      %vm80 = vcmask 253952
      %81 = vst.msk [vmem:[#allocation2] sm:$0x1] %vm80, 0.0
    $region13: #{tpu_custom_call.1} parent=1 // pred_fallthru
      _
    %s82 = sadd.s32 0, 0
    %s83 = smul.u32 %s82, 16
    %v84 = vld [vmem:[%s59] sm:$0xff]
    %v85 = vld [vmem:[%s59 + $0x8] sm:$0xff]
    %v86 = vld [vmem:[%s71] sm:$0xff]
    %v87 = vld [vmem:[%s71 + $0x8] sm:$0xff]
    %s88 = sadd.s32 %s83, 0
    %v89 = vlaneseq
    %v90 = vshrl.u32 %v89, 7
    %v91 = vadd.s32 %v90, 8
    %v92 = vstv %s88
    %v93 = vadd.s32 %v92, %v90
    %v94 = vadd.s32 %v92, %v91
    %vm95 = vcmp.ne.s32.totalorder %v86, 0
    %vm96 = vcmp.ne.s32.totalorder %v87, 0
    %vm97 = vcmp.lt.s32.totalorder %v93, 16
    %vm98 = vcmp.lt.s32.totalorder %v94, 16
    %vm99 = vmand %vm95, %vm97
    %vm100 = vmand %vm96, %vm98
    %v101 = vsel %vm99, %v86, 4294967295
    %v102 = vsel %vm100, %v87, 4294967295
    %v103 = vlaneseq
    %v104 = vand.u32 %v103, 127
    %105 = vset.pattern.permute.xlu0 0
    %106 = vperm.xlu0 %105, %v101
    %v107 = vpop.permute.xlu0 %106
    %108 = vset.pattern.permute.xlu0 0
    %109 = vperm.xlu0 %108, %v102
    %v110 = vpop.permute.xlu0 %109
    %vm111 = vcmp.eq.s32.totalorder %v104, %v107
    %vm112 = vcmp.eq.s32.totalorder %v104, %v110
    %v113 = vsel %vm111, %v84, 0.0
    %v114 = vsel %vm112, %v85, 0.0
    %v115 = vld [vmem:[#allocation2] sm:$0x1]
    %vm116 = vcmask 261120
    %v117 = vsel %vm116, %v113, 0.0
    %v118 = vsel %vm116, %v114, 0.0
    %v119 = vadd.f32 %v117, %v118
    %v120 = vrot.slane %v119, 4
    %v121 = vadd.f32 %v119, %v120
    %v122 = vrot.slane %v121, 2
    %v123 = vadd.f32 %v121, %v122
    %v124 = vrot.slane %v123, 1
    %v125 = vadd.f32 %v123, %v124
    %v126 = vadd.f32 %v115, %v125
    %vm127 = vcmask 253952
    %128 = vst.msk [vmem:[#allocation2] sm:$0x1] %vm127, %v126
    // Predicated region
    $region14: #{tpu_custom_call.1} parent=1 // pred_check
      %p129 = pneg %p76
    $region15: #{tpu_custom_call.1} parent=1 // pred_check_branch
      %131 = sbr.rel (%p129) target = $region17
    $region16: #{tpu_custom_call.1} parent=1 // pred_region
      %v132 = vld [vmem:[#allocation2] sm:$0x1]
      %v133 = vsel %vm127, %v132, 0.0
      %134 = vadd.xlane.f32.xlu0 %v133
      %v135 = vpop.xlane.xlu0 %134
      %v136 = vsub.f32 0.0, %v135
      %vm137 = vcmask 0
      %138 = vst.msk [vmem:[#allocation3] sm:$0x1] %vm137, %v136
    $region17: #{tpu_custom_call.1} parent=1 // pred_fallthru
      _
    // Predicated region
    $region18: #{tpu_custom_call.1} parent=1 // pred_check
      _
    $region19: #{tpu_custom_call.1} parent=1 // pred_check_branch
      %140 = sbr.rel (0) target = $region21
    $region20: #{tpu_custom_call.1} parent=1 // pred_region
      %s142 = ssub.s32 16, 16
      %143 = vsyncadd [#allocation4], %s142
      %s145 = sshll.u32 [#allocation3], 4
      %s146 = int_to_ptr.vmem [resolvable:$true] %s145
      %148 = dma.vmem_to_hbm [thread:$0]  %s146, 16, %s2, [#allocation4]
    $region21: #{tpu_custom_call.1} parent=1 // pred_fallthru
      _
    // Predicated region
    $region22: #{tpu_custom_call.1} parent=1 // pred_check
      _
    $region23: #{tpu_custom_call.1} parent=1 // pred_check_branch
      %150 = sbr.rel (0) target = $region25
    $region24: #{tpu_custom_call.1} parent=1 // pred_region
      %151 = dma.done [#allocation4], 16
    $region25: #{tpu_custom_call.1} parent=1 // pred_fallthru
      _
    %152 = vsyncpa [#allocation4], 1

</llo_original>
